<compile_context>
chip_gen: v5e
topology: v5e:2x2
jax: 0.10.0
libtpu: 0.0.40
codegen_flags: <defaults>
</compile_context>

<pallas_src>
import jax
import jax.numpy as jnp
from jax.experimental import pallas as pl
from jax.experimental.pallas import tpu as pltpu

# ----------------------------- hyperparameters ------------------------------
B = 2            # batch
T = 16           # EEG time samples
C_EEG = 4        # EEG channels
F = 8            # conformer-stem conv filters
KT = 5           # temporal conv kernel width
T_OUT = T - KT + 1   # 12
E = 32           # text_embedding_size (and Conformer output feature size)
H = 32           # hidden_size
K = 4            # num_classes

B_PAD = 8        # batch rows padded to one sublane group
LANES = 128      # lane width for all packed slabs / intermediates

TEXT_LANE = T * C_EEG    # 64: first input-slab lane holding text (E=32 lanes)
CONV_LANES = T_OUT * F   # 96: conv-output lanes in s; text passthrough is 96..127

# ---- packed-parameter slab row offsets (all starts are 8-row aligned) -------
R_WBIG = 0                 # (128, 128) fused conv weight + text-identity block
R_BBIG = 128               # (1, 128)   fused conv bias (text lanes = 0)
R_WEEG = 136               # (128, 128) fc1: pooled/projected EEG half + w1a rows
R_B1 = 264                 # (1, 128)   fc1 bias (bp folded in), lanes H:128 = 0
R_W2 = 272                 # (128, 128) fc2 weight (H rows, K lanes real)
R_B2 = 400                 # (1, 128)   fc2 bias; lanes K:128 = -1e30
P_ROWS = 408               # total rows (multiple of 8) -> ~204 KiB f32 slab


# --------------------------------- kernel -----------------------------------
def multi_input_kernel(x_ref, p_ref, out_ref):
    x = x_ref[...]                                   # (8, 128): eeg | text | 0

    # ---- stem: fused temporal+spatial conv AND text passthrough, one matmul ----
    w_big = p_ref[R_WBIG:R_WBIG + LANES, :]          # (128, 128)
    b_big = p_ref[R_BBIG:R_BBIG + 1, :]              # (1, 128)
    s = jnp.dot(x, w_big, preferred_element_type=jnp.float32) + b_big  # (8, 128)

    # ELU on the conv lanes (< CONV_LANES); identity on the text lanes.
    # expm1-accurate negative branch without relying on a lax.expm1 lowering:
    # exp(x)-1 everywhere, 2nd-order Taylor for tiny |x| (abs err < 1e-9 there).
    xm = jnp.minimum(s, 0.0)
    em1 = jnp.exp(xm) - 1.0
    em1 = jnp.where(xm > -1e-3, xm + 0.5 * xm * xm, em1)
    lane = jax.lax.broadcasted_iota(jnp.int32, (B_PAD, LANES), 1)
    s = jnp.where((lane < CONV_LANES) & (s <= 0.0), em1, s)

    # ---- fc1(concat([text, eeg_emb])) as ONE matmul (pool + proj + w1a fused) ----
    w_fc1 = p_ref[R_WEEG:R_WEEG + LANES, :]          # (128, 128)
    b1 = p_ref[R_B1:R_B1 + 1, :]                     # (1, 128)
    z = jnp.dot(s, w_fc1, preferred_element_type=jnp.float32) + b1      # (8, 128)
    z = jnp.maximum(z, 0.0)                          # ReLU; pad lanes stay 0

    # ---- fc2 + softmax(dim=1) ----------------------------------------------
    w2 = p_ref[R_W2:R_W2 + LANES, :]                 # (128, 128)
    b2 = p_ref[R_B2:R_B2 + 1, :]                     # (1, 128); pad lanes = -1e30
    logits = jnp.dot(z, w2, preferred_element_type=jnp.float32) + b2    # (8, 128)

    m = jnp.max(logits, axis=1, keepdims=True)
    ez = jnp.exp(logits - m)                         # padded lanes underflow to 0
    out_ref[...] = ez / jnp.sum(ez, axis=1, keepdims=True)   # full unmasked store


# -------------------------------- wrapper ------------------------------------
@jax.jit
def multi_input_forward(text_input, eeg_input, packed_params):
    """text_input: (B, E); eeg_input: (B, T, C_EEG); packed_params: (P_ROWS, 128)."""
    text = text_input.astype(jnp.float32)
    eeg = eeg_input.astype(jnp.float32)              # matches `.float()` in forward
    b = text.shape[0]

    # One packed (8,128) input slab: lanes 0..63 = flattened EEG, 64..95 = text.
    x = jnp.zeros((B_PAD, LANES), jnp.float32)
    x = x.at[:b, :T * C_EEG].set(eeg.reshape(b, T * C_EEG))
    x = x.at[:b, TEXT_LANE:TEXT_LANE + E].set(text)

    vmem = pl.BlockSpec(memory_space=pltpu.MemorySpace.VMEM)
    out = pl.pallas_call(
        multi_input_kernel,
        out_shape=jax.ShapeDtypeStruct((B_PAD, LANES), jnp.float32),
        in_specs=[vmem, vmem],
        out_specs=vmem,
    )(x, packed_params)
    return out[:b, :K]


# ------------------------- raw params + host packing --------------------------
def init_params(key):
    ks = jax.random.split(key, 10)

    def rnd(k, shape, scale):
        return (scale * jax.random.normal(k, shape)).astype(jnp.float32)

    return {
        # Conformer-stem stand-in
        "wt": rnd(ks[0], (KT, F), 0.2),           # temporal conv weight
        "bt": jnp.zeros((1, F), jnp.float32),
        "ws": rnd(ks[1], (C_EEG, F, F), 0.2),     # spatial conv weight
        "bs": jnp.zeros((1, F), jnp.float32),
        "wp": rnd(ks[2], (F, E), 0.2),            # projection F -> E
        "bp": jnp.zeros((1, E), jnp.float32),
        # fc1: Linear(2E -> H), stored split as [text half, eeg half]
        "w1a": rnd(ks[3], (E, H), 0.1),
        "w1b": rnd(ks[4], (E, H), 0.1),
        "b1": jnp.zeros((1, H), jnp.float32),
        # fc2: Linear(H -> K)
        "w2": rnd(ks[5], (H, K), 0.1),
        "b2": jnp.zeros((1, K), jnp.float32),
    }


def pack_params(p):
    """Fold the linear chain and pack everything into one (P_ROWS, 128) slab."""
    wt, bt, ws, bs = p["wt"], p["bt"], p["ws"], p["bs"]
    wp, bp = p["wp"], p["bp"]
    w1a, w1b, b1 = p["w1a"], p["w1b"], p["b1"]
    w2, b2 = p["w2"], p["b2"]

    # Fuse temporal+spatial conv: W_comb[k,c,g] = sum_f wt[k,f]*ws[c,f,g],
    # laid out as a block-Toeplitz matrix so the whole conv is x[:, :64] @ wb.
    w_kcg = jnp.einsum("kf,cfg->kcg", wt, ws)                  # (KT, C, F)
    wb = jnp.zeros((T, C_EEG, T_OUT, F), jnp.float32)
    for t in range(T_OUT):
        wb = wb.at[t:t + KT, :, t, :].set(w_kcg)
    wb = wb.reshape(T * C_EEG, CONV_LANES)                     # (64, 96)
    b_comb = bs[0] + jnp.einsum("f,cfg->g", bt[0], ws)         # (F,)  bt folded in
    b_big = jnp.tile(b_comb, T_OUT)                            # (96,)

    # Stem matmul weight (128,128): conv rows 0..63 -> lanes 0..95;
    # text rows 64..95 -> identity -> lanes 96..127 (pure passthrough).
    w_big = jnp.zeros((LANES, LANES), jnp.float32)
    w_big = w_big.at[:T * C_EEG, :CONV_LANES].set(wb)
    w_big = w_big.at[TEXT_LANE:TEXT_LANE + E,
                     CONV_LANES:CONV_LANES + E].set(jnp.eye(E, dtype=jnp.float32))

    # Fused fc1 (128,128): rows 0..95 = time-average pool + (F->E proj) folded
    # into the EEG half w1b; rows 96..127 = text half w1a.
    w1b_eff = wp @ w1b                                         # (F, H)
    w_fc1 = jnp.zeros((LANES, LANES), jnp.float32)
    w_fc1 = w_fc1.at[:CONV_LANES, :H].set(jnp.tile(w1b_eff / T_OUT, (T_OUT, 1)))
    w_fc1 = w_fc1.at[CONV_LANES:CONV_LANES + E, :H].set(w1a)
    b1_eff = b1[0] + bp[0] @ w1b                               # (H,)  bp folded in

    slab = jnp.zeros((P_ROWS, LANES), jnp.float32)
    slab = slab.at[R_WBIG:R_WBIG + LANES, :].set(w_big)
    slab = slab.at[R_BBIG, :CONV_LANES].set(b_big)
    slab = slab.at[R_WEEG:R_WEEG + LANES, :].set(w_fc1)
    slab = slab.at[R_B1, :H].set(b1_eff)
    slab = slab.at[R_W2:R_W2 + H, :K].set(w2)
    # NOTE: the full-width softmax padding trick relies on lanes H:128 of the
    # fc1 region and lanes K:128 of the w2 rows staying EXACTLY zero, and on the
    # -1e30 bias below covering lanes K:128.  Do not write nonzero values there.
    slab = slab.at[R_B2, :].set(jnp.full((LANES,), -1e30, jnp.float32))
    slab = slab.at[R_B2, :K].set(b2[0])
    return slab


# ------------------------- pure-JAX (unfused) reference -----------------------
def reference_forward(text, eeg, p):
    hp = jax.lax.Precision.HIGHEST
    x = eeg.astype(jnp.float32)
    text = text.astype(jnp.float32)
    # temporal conv over time (valid padding), + bt
    h = sum(x[:, k:k + T_OUT, :, None] * p["wt"][k][None, None, None, :]
            for k in range(KT)) + p["bt"]                      # (B, T_OUT, C, F)
    # spatial conv: contract EEG channels, + bs
    s = jnp.einsum("btcf,cfg->btg", h, p["ws"], precision=hp) + p["bs"]
    s = jnp.where(s > 0, s, jnp.expm1(s))                      # ELU
    feat = jnp.mean(s, axis=1)                                 # (B, F)
    eeg_emb = jnp.dot(feat, p["wp"], precision=hp) + p["bp"]   # (B, E)
    z = jnp.maximum(jnp.dot(text, p["w1a"], precision=hp)
                    + jnp.dot(eeg_emb, p["w1b"], precision=hp) + p["b1"], 0.0)
    logits = jnp.dot(z, p["w2"], precision=hp) + p["b2"]
    return jax.nn.softmax(logits, axis=1)


if __name__ == "__main__":
    key = jax.random.PRNGKey(0)
    k_text, k_eeg, k_par = jax.random.split(key, 3)

    text_input = jax.random.normal(k_text, (B, E), dtype=jnp.float32)
    eeg_input = jax.random.normal(k_eeg, (B, T, C_EEG), dtype=jnp.float32)
    params = init_params(k_par)
    packed = pack_params(params)        # one-time host-side fold + pack

    out = multi_input_forward(text_input, eeg_input, packed)
    out = jax.block_until_ready(out)

    assert out.shape == (B, K)
    assert bool(jnp.all(jnp.isfinite(out)))
    row_sums = jnp.sum(out, axis=1)
    assert bool(jnp.all(jnp.abs(row_sums - 1.0) < 1e-5))

    ref = reference_forward(text_input, eeg_input, params)
    assert bool(jnp.allclose(out, ref, rtol=5e-3, atol=5e-3)), (
        "kernel/reference mismatch: "
        f"max abs diff = {float(jnp.max(jnp.abs(out - ref)))}")

    print("KERNEL_OK")
</pallas_src>

<mosaic_0001>
module attributes {stable_mosaic.version = 11 : i64} {
  func.func @multi_input_kernel(%arg0: memref<8x128xf32, #tpu.memory_space<vmem>>, %arg1: memref<408x128xf32, #tpu.memory_space<vmem>>, %arg2: memref<8x128xf32, #tpu.memory_space<vmem>>) attributes {dimension_semantics = [], scalar_prefetch = 0 : i64, scratch_operands = 0 : i64, tpu.core_type = #tpu.core_type<tc>} {
    %c0 = arith.constant 0 : index
    %c0_0 = arith.constant 0 : index
    %0 = vector.load %arg0[%c0, %c0_0] : memref<8x128xf32, #tpu.memory_space<vmem>>, vector<8x128xf32>
    %c0_1 = arith.constant 0 : index
    %c0_2 = arith.constant 0 : index
    %1 = vector.load %arg1[%c0_1, %c0_2] : memref<408x128xf32, #tpu.memory_space<vmem>>, vector<128x128xf32>
    %c128 = arith.constant 128 : index
    %c0_3 = arith.constant 0 : index
    %2 = vector.load %arg1[%c128, %c0_3] : memref<408x128xf32, #tpu.memory_space<vmem>>, vector<1x128xf32>
    %cst = arith.constant dense<0.000000e+00> : vector<8x128xf32>
    %3 = tpu.matmul %0, %1, %cst {dimension_numbers = #tpu.dot_dimension_numbers<[1], [0], [0], [1], [0, 0, 1, 1], [], []>} : vector<8x128xf32>, vector<128x128xf32>, vector<8x128xf32> -> vector<8x128xf32>
    %4 = vector.broadcast %2 : vector<1x128xf32> to vector<8x128xf32>
    %5 = arith.addf %3, %4 : vector<8x128xf32>
    %cst_4 = arith.constant 0.000000e+00 : f32
    %6 = vector.broadcast %cst_4 : f32 to vector<8x128xf32>
    %7 = arith.minimumf %5, %6 : vector<8x128xf32>
    %8 = math.exp %7 : vector<8x128xf32>
    %cst_5 = arith.constant 1.000000e+00 : f32
    %9 = vector.broadcast %cst_5 : f32 to vector<8x128xf32>
    %10 = arith.subf %8, %9 : vector<8x128xf32>
    %cst_6 = arith.constant -1.000000e-03 : f32
    %11 = vector.broadcast %cst_6 : f32 to vector<8x128xf32>
    %12 = arith.cmpf ogt, %7, %11 : vector<8x128xf32>
    %cst_7 = arith.constant 5.000000e-01 : f32
    %13 = vector.broadcast %cst_7 : f32 to vector<8x128xf32>
    %14 = arith.mulf %13, %7 : vector<8x128xf32>
    %15 = arith.mulf %14, %7 : vector<8x128xf32>
    %16 = arith.addf %7, %15 : vector<8x128xf32>
    %17 = arith.select %12, %16, %10 : vector<8x128xi1>, vector<8x128xf32>
    %18 = tpu.iota {dimensions = array<i32: 1>} : vector<8x128xi32>
    %c96_i32 = arith.constant 96 : i32
    %19 = vector.broadcast %c96_i32 : i32 to vector<8x128xi32>
    %20 = arith.cmpi slt, %18, %19 : vector<8x128xi32>
    %cst_8 = arith.constant 0.000000e+00 : f32
    %21 = vector.broadcast %cst_8 : f32 to vector<8x128xf32>
    %22 = arith.cmpf ole, %5, %21 : vector<8x128xf32>
    %23 = arith.andi %20, %22 : vector<8x128xi1>
    %24 = arith.select %23, %17, %5 : vector<8x128xi1>, vector<8x128xf32>
    %c136 = arith.constant 136 : index
    %c0_9 = arith.constant 0 : index
    %25 = vector.load %arg1[%c136, %c0_9] : memref<408x128xf32, #tpu.memory_space<vmem>>, vector<128x128xf32>
    %c264 = arith.constant 264 : index
    %c0_10 = arith.constant 0 : index
    %26 = vector.load %arg1[%c264, %c0_10] : memref<408x128xf32, #tpu.memory_space<vmem>>, vector<1x128xf32>
    %cst_11 = arith.constant dense<0.000000e+00> : vector<8x128xf32>
    %27 = tpu.matmul %24, %25, %cst_11 {dimension_numbers = #tpu.dot_dimension_numbers<[1], [0], [0], [1], [0, 0, 1, 1], [], []>} : vector<8x128xf32>, vector<128x128xf32>, vector<8x128xf32> -> vector<8x128xf32>
    %28 = vector.broadcast %26 : vector<1x128xf32> to vector<8x128xf32>
    %29 = arith.addf %27, %28 : vector<8x128xf32>
    %cst_12 = arith.constant 0.000000e+00 : f32
    %30 = vector.broadcast %cst_12 : f32 to vector<8x128xf32>
    %31 = arith.maximumf %29, %30 : vector<8x128xf32>
    %c272 = arith.constant 272 : index
    %c0_13 = arith.constant 0 : index
    %32 = vector.load %arg1[%c272, %c0_13] : memref<408x128xf32, #tpu.memory_space<vmem>>, vector<128x128xf32>
    %c400 = arith.constant 400 : index
    %c0_14 = arith.constant 0 : index
    %33 = vector.load %arg1[%c400, %c0_14] : memref<408x128xf32, #tpu.memory_space<vmem>>, vector<1x128xf32>
    %cst_15 = arith.constant dense<0.000000e+00> : vector<8x128xf32>
    %34 = tpu.matmul %31, %32, %cst_15 {dimension_numbers = #tpu.dot_dimension_numbers<[1], [0], [0], [1], [0, 0, 1, 1], [], []>} : vector<8x128xf32>, vector<128x128xf32>, vector<8x128xf32> -> vector<8x128xf32>
    %35 = vector.broadcast %33 : vector<1x128xf32> to vector<8x128xf32>
    %36 = arith.addf %34, %35 : vector<8x128xf32>
    %cst_16 = arith.constant dense<0xFF800000> : vector<8xf32>
    %37 = vector.multi_reduction <maximumf>, %36, %cst_16 [1] : vector<8x128xf32> to vector<8xf32>
    %38 = vector.shape_cast %37 : vector<8xf32> to vector<8x1xf32>
    %39 = vector.broadcast %38 : vector<8x1xf32> to vector<8x128xf32>
    %40 = arith.subf %36, %39 : vector<8x128xf32>
    %41 = math.exp %40 : vector<8x128xf32>
    %cst_17 = arith.constant dense<0.000000e+00> : vector<8xf32>
    %42 = vector.multi_reduction <add>, %41, %cst_17 [1] : vector<8x128xf32> to vector<8xf32>
    %43 = vector.shape_cast %42 : vector<8xf32> to vector<8x1xf32>
    %44 = vector.broadcast %43 : vector<8x1xf32> to vector<8x128xf32>
    %45 = arith.divf %41, %44 : vector<8x128xf32>
    %c0_18 = arith.constant 0 : index
    %c0_19 = arith.constant 0 : index
    %46 = vector.load %arg2[%c0_18, %c0_19] : memref<8x128xf32, #tpu.memory_space<vmem>>, vector<8x128xf32>
    tpu.vector_store %arg2[%c0_18, %c0_19], %45 {strides = array<i32>} : memref<8x128xf32, #tpu.memory_space<vmem>>, vector<8x128xf32>,
    return
  }
}

</mosaic_0001>

<llo_original>
// kernel: multi_input_forward.1
$region0: #{multi_input_forward.1}
  #allocation0 [shape = 'u32[]', space=smem, size = 0x4, offset = 0x4, fixed_abs, tag = 'smem constant byte address 0x4 - core index']
  #allocation1 [shape = 'u32[72,128]{1,0:T(1,128)}', space=vmem, size = 0x9000, scoped, tag = 'internal scratch']
  %s0 = inlined_call_operand.vmem [shape: f32[8,128], index: 0, kind: input, shape index: {}]
  %s1 = inlined_call_operand.hbm [shape: f32[408,128], index: 1, kind: input, shape index: {}]
  %s2 = inlined_call_operand.vmem [shape: f32[8,128], index: 2, kind: output, shape index: {}]
  %s3 = sld [smem:[#allocation0]]
  $region22: #{multi_input_forward.1} parent=0
    _
  %s5 = ssub.s32 1, %s3
  %s6 = scalar_select 0, %s5, %s3
  $region1: #{multi_input_forward.1} parent=0
    #allocation2 [shape = 'u8[208896]{0}', space=vmem, size = 0x33000, scoped, tag = 'input window, operand 1, single buffered']
    #allocation3 [shape = 's32[1]{0}', space=sflag, size = 0x4, scoped, tag = 'scoped memory for multi_input_forward.1']
    %7 = vsyncpa [#allocation3], 0
    // Predicated region
    $region2: #{multi_input_forward.1} parent=1 // pred_check
      _
    $region3: #{multi_input_forward.1} parent=1 // pred_check_branch
      %9 = sbr.rel (0) target = $region5
    $region4: #{multi_input_forward.1} parent=1 // pred_region
      _
    $region5: #{multi_input_forward.1} parent=1 // pred_fallthru
      _
    // Predicated region
    $region6: #{multi_input_forward.1} parent=1 // pred_check
      _
    $region7: #{multi_input_forward.1} parent=1 // pred_check_branch
      %11 = sbr.rel (0) target = $region9
    $region8: #{multi_input_forward.1} parent=1 // pred_region
      %13 = vsyncadd [#allocation3], 0
      %s14 = sshll.u32 %s1, 4
      %s15 = int_to_ptr.hbm [resolvable:$true] %s14
      %s16 = sshll.u32 [#allocation2], 4
      %s17 = int_to_ptr.vmem [resolvable:$true] %s16
      %22 = dma.hbm_to_vmem [thread:$0]  %s15, 6528, %s17, [#allocation3], 128, 128, 8
    $region9: #{multi_input_forward.1} parent=1 // pred_fallthru
      _
    // Predicated region
    $region10: #{multi_input_forward.1} parent=1 // pred_check
      _
    $region11: #{multi_input_forward.1} parent=1 // pred_check_branch
      %24 = sbr.rel (0) target = $region13
    $region12: #{multi_input_forward.1} parent=1 // pred_region
      %26 = dma.done [#allocation3], 6528
    $region13: #{multi_input_forward.1} parent=1 // pred_fallthru
      _
    %v27 = vld [vmem:[%s0] sm:$0xff]
    %v28 = vld [vmem:[#allocation2] sm:$0xff]
    %v29 = vld [vmem:[#allocation2 + $0x8] sm:$0xff]
    %v30 = vld [vmem:[#allocation2 + $0x10] sm:$0xff]
    %v31 = vld [vmem:[#allocation2 + $0x18] sm:$0xff]
    %v32 = vld [vmem:[#allocation2 + $0x20] sm:$0xff]
    %v33 = vld [vmem:[#allocation2 + $0x28] sm:$0xff]
    %v34 = vld [vmem:[#allocation2 + $0x30] sm:$0xff]
    %v35 = vld [vmem:[#allocation2 + $0x38] sm:$0xff]
    %v36 = vld [vmem:[#allocation2 + $0x40] sm:$0xff]
    %v37 = vld [vmem:[#allocation2 + $0x48] sm:$0xff]
    %v38 = vld [vmem:[#allocation2 + $0x50] sm:$0xff]
    %v39 = vld [vmem:[#allocation2 + $0x58] sm:$0xff]
    %v40 = vld [vmem:[#allocation2 + $0x60] sm:$0xff]
    %v41 = vld [vmem:[#allocation2 + $0x68] sm:$0xff]
    %v42 = vld [vmem:[#allocation2 + $0x70] sm:$0xff]
    %v43 = vld [vmem:[#allocation2 + $0x78] sm:$0xff]
    %v44 = vld [vmem:[#allocation2 + $0x80] sm:$0x1]
    %v45 = vperm.slane %v44, 0
    %46 = vmatpush.msra.mxu0 %v43
    %47 = vmatpush.msra.mxu0 %v42
    %48 = vmatpush.msra.mxu0 %v41
    %49 = vmatpush.msra.mxu0 %v40
    %50 = vmatpush.msra.mxu0 %v39
    %51 = vmatpush.msra.mxu0 %v38
    %52 = vmatpush.msra.mxu0 %v37
    %53 = vmatpush.msra.mxu0 %v36
    %54 = vmatpush.msra.mxu0 %v35
    %55 = vmatpush.msra.mxu0 %v34
    %56 = vmatpush.msra.mxu0 %v33
    %57 = vmatpush.msra.mxu0 %v32
    %58 = vmatpush.msra.mxu0 %v31
    %59 = vmatpush.msra.mxu0 %v30
    %60 = vmatpush.msra.mxu0 %v29
    %61 = vmatpush.msra.mxu0 %v28
    %62 = vmatmul.f32.gmra.mxu0 %v27
    %v63 = vpop.f32.mrf.mxu0
    %v64 = vadd.f32 %v45, %v63
    %65 = vdwg.mxu0
    %v66 = vmin.f32 %v64, 0.0
    %v67 = vmul.f32 %v66, 1.442695
    %v68 = vpow.pop %v67
    %v69 = vsub.f32 %v68, 1.0
    %vm70 = vcmp.gt.f32.partialorder %v66, -0.001
    %v71 = vmul.f32 %v66, 0.5
    %v72 = vmul.f32 %v71, %v66
    %v73 = vadd.f32 %v66, %v72
    %v74 = vsel %vm70, %v73, %v69
    %v75 = vlaneseq
    %v76 = vand.u32 %v75, 127
    %vm77 = vcmp.lt.s32.totalorder %v76, 96
    %vm78 = vcmp.le.f32.partialorder %v64, 0.0
    %vm79 = vmand %vm77, %vm78
    %v80 = vsel %vm79, %v74, %v64
    %v81 = vld [vmem:[#allocation2 + $0x88] sm:$0xff]
    %v82 = vld [vmem:[#allocation2 + $0x90] sm:$0xff]
    %v83 = vld [vmem:[#allocation2 + $0x98] sm:$0xff]
    %v84 = vld [vmem:[#allocation2 + $0xa0] sm:$0xff]
    %v85 = vld [vmem:[#allocation2 + $0xa8] sm:$0xff]
    %v86 = vld [vmem:[#allocation2 + $0xb0] sm:$0xff]
    %v87 = vld [vmem:[#allocation2 + $0xb8] sm:$0xff]
    %v88 = vld [vmem:[#allocation2 + $0xc0] sm:$0xff]
    %v89 = vld [vmem:[#allocation2 + $0xc8] sm:$0xff]
    %v90 = vld [vmem:[#allocation2 + $0xd0] sm:$0xff]
    %v91 = vld [vmem:[#allocation2 + $0xd8] sm:$0xff]
    %v92 = vld [vmem:[#allocation2 + $0xe0] sm:$0xff]
    %v93 = vld [vmem:[#allocation2 + $0xe8] sm:$0xff]
    %v94 = vld [vmem:[#allocation2 + $0xf0] sm:$0xff]
    %v95 = vld [vmem:[#allocation2 + $0xf8] sm:$0xff]
    %v96 = vld [vmem:[#allocation2 + $0x100] sm:$0xff]
    %v97 = vld [vmem:[#allocation2 + $0x108] sm:$0x1]
    %v98 = vperm.slane %v97, 0
    %99 = vmatpush.msra.mxu0 %v96
    %100 = vmatpush.msra.mxu0 %v95
    %101 = vmatpush.msra.mxu0 %v94
    %102 = vmatpush.msra.mxu0 %v93
    %103 = vmatpush.msra.mxu0 %v92
    %104 = vmatpush.msra.mxu0 %v91
    %105 = vmatpush.msra.mxu0 %v90
    %106 = vmatpush.msra.mxu0 %v89
    %107 = vmatpush.msra.mxu0 %v88
    %108 = vmatpush.msra.mxu0 %v87
    %109 = vmatpush.msra.mxu0 %v86
    %110 = vmatpush.msra.mxu0 %v85
    %111 = vmatpush.msra.mxu0 %v84
    %112 = vmatpush.msra.mxu0 %v83
    %113 = vmatpush.msra.mxu0 %v82
    %114 = vmatpush.msra.mxu0 %v81
    %115 = vmatmul.f32.gmra.mxu0 %v80
    %v116 = vpop.f32.mrf.mxu0
    %v117 = vadd.f32 %v98, %v116
    %118 = vdwg.mxu0
    %v119 = vmax.f32 %v117, 0.0
    %v120 = vld [vmem:[#allocation2 + $0x110] sm:$0xff]
    %v121 = vld [vmem:[#allocation2 + $0x118] sm:$0xff]
    %v122 = vld [vmem:[#allocation2 + $0x120] sm:$0xff]
    %v123 = vld [vmem:[#allocation2 + $0x128] sm:$0xff]
    %v124 = vld [vmem:[#allocation2 + $0x130] sm:$0xff]
    %v125 = vld [vmem:[#allocation2 + $0x138] sm:$0xff]
    %v126 = vld [vmem:[#allocation2 + $0x140] sm:$0xff]
    %v127 = vld [vmem:[#allocation2 + $0x148] sm:$0xff]
    %v128 = vld [vmem:[#allocation2 + $0x150] sm:$0xff]
    %v129 = vld [vmem:[#allocation2 + $0x158] sm:$0xff]
    %v130 = vld [vmem:[#allocation2 + $0x160] sm:$0xff]
    %v131 = vld [vmem:[#allocation2 + $0x168] sm:$0xff]
    %v132 = vld [vmem:[#allocation2 + $0x170] sm:$0xff]
    %v133 = vld [vmem:[#allocation2 + $0x178] sm:$0xff]
    %v134 = vld [vmem:[#allocation2 + $0x180] sm:$0xff]
    %v135 = vld [vmem:[#allocation2 + $0x188] sm:$0xff]
    %v136 = vld [vmem:[#allocation2 + $0x190] sm:$0x1]
    %v137 = vperm.slane %v136, 0
    %138 = vmatpush.msra.mxu0 %v135
    %139 = vmatpush.msra.mxu0 %v134
    %140 = vmatpush.msra.mxu0 %v133
    %141 = vmatpush.msra.mxu0 %v132
    %142 = vmatpush.msra.mxu0 %v131
    %143 = vmatpush.msra.mxu0 %v130
    %144 = vmatpush.msra.mxu0 %v129
    %145 = vmatpush.msra.mxu0 %v128
    %146 = vmatpush.msra.mxu0 %v127
    %147 = vmatpush.msra.mxu0 %v126
    %148 = vmatpush.msra.mxu0 %v125
    %149 = vmatpush.msra.mxu0 %v124
    %150 = vmatpush.msra.mxu0 %v123
    %151 = vmatpush.msra.mxu0 %v122
    %152 = vmatpush.msra.mxu0 %v121
    %153 = vmatpush.msra.mxu0 %v120
    %154 = vmatmul.f32.gmra.mxu0 %v119
    %v155 = vpop.f32.mrf.mxu0
    %v156 = vadd.f32 %v137, %v155
    %157 = vdwg.mxu0
    %158 = vmax.xlane.f32.xlu0 %v156
    %v159 = vpop.xlane.xlu0 %158
    %v160 = vsub.f32 %v156, %v159
    %v161 = vmul.f32 %v160, 1.442695
    %v162 = vpow.pop %v161
    %163 = vadd.xlane.f32.xlu0 %v162
    %v164 = vpop.xlane.xlu0 %163
    %v165 = vrcp.pop %v164
    %v166 = vmul.f32 %v164, %v165
    %v167 = vsub.f32 1.0, %v166
    %v168 = vmul.f32 %v165, %v167
    %v169 = vadd.f32 %v165, %v168
    %vm170 = vweird.f32 %v164
    %vm171 = vweird.f32 %v165
    %vm172 = vmor %vm170, %vm171
    %v173 = vsel %vm172, %v165, %v169
    %v174 = vand.u32 2147483647, %v164
    %vm175 = vcmp.eq.f32.partialorder %v174, 8.507059e+37
    %v176 = vand.u32 %v164, 2147483648
    %v177 = vor.u32 1.1754944e-38, %v176
    %v178 = vsel %vm175, %v177, %v173
    %v179 = vmul.f32 %v162, %v178
    %180 = vst [vmem:[%s2] sm:$0xff] %v179
    // Predicated region
    $region14: #{multi_input_forward.1} parent=1 // pred_check
      _
    $region15: #{multi_input_forward.1} parent=1 // pred_check_branch
      %182 = sbr.rel (0) target = $region17
    $region16: #{multi_input_forward.1} parent=1 // pred_region
      _
    $region17: #{multi_input_forward.1} parent=1 // pred_fallthru
      _
    // Predicated region
    $region18: #{multi_input_forward.1} parent=1 // pred_check
      _
    $region19: #{multi_input_forward.1} parent=1 // pred_check_branch
      %184 = sbr.rel (0) target = $region21
    $region20: #{multi_input_forward.1} parent=1 // pred_region
      _
    $region21: #{multi_input_forward.1} parent=1 // pred_fallthru
      _
    %185 = vsyncpa [#allocation3], 1

</llo_original>
